<compile_context>
chip_gen: v5e
topology: v5e:2x2
jax: 0.10.0
libtpu: 0.0.40
codegen_flags: <defaults>
</compile_context>

<pallas_src>
import functools

import jax
import jax.numpy as jnp
from jax.experimental import pallas as pl
from jax.experimental.pallas import tpu as pltpu


def _round_up(x, m):
    return (x + m - 1) // m * m


H1, H2 = 96, 64                # hidden sizes from the PyTorch module
H1P = _round_up(H1, 128)       # 128 (lane-dense hidden width)
H2P = _round_up(H2, 128)       # 128


def vae_kernel(
    x_ref, noise_ref,
    w1_ref, b1_ref, w2_ref, b2_ref,
    wh_ref, bh_ref,                       # fused [Wmu | Wsig], [bmu | bsig]
    v1_ref, c1_ref, v2_ref, c2_ref, v3_ref, c3_ref,
    out_ref, kl_ref,
    *, batch, tile_b, latent, lat_pad,
):
    i = pl.program_id(0)
    x = x_ref[...]                                     # (tb, D) natural width

    # ---------------- Encoder ----------------
    h1 = jnp.dot(x, w1_ref[...], preferred_element_type=jnp.float32) + b1_ref[...]
    h1 = jnp.maximum(h1, 0.0)
    h2 = jnp.dot(h1, w2_ref[...], preferred_element_type=jnp.float32) + b2_ref[...]
    h2 = jnp.maximum(h2, 0.0)

    # Fused mu / log-var head: one wide matmul, lane-aligned (0 / 128) slices.
    head = jnp.dot(h2, wh_ref[...], preferred_element_type=jnp.float32) + bh_ref[...]
    mu = head[:, :lat_pad]                             # padded cols are exactly 0
    sigma = head[:, lat_pad:]                          # padded cols are exactly 0
    std = jnp.exp(0.5 * sigma)                         # padded cols are exactly 1

    # Reparameterize at the natural latent width: noise is streamed unpadded
    # (tb, L), so no dead lanes are DMA'd from HBM for it.
    z = mu[:, :latent] + std[:, :latent] * noise_ref[...]     # (tb, L)

    # Per-tile KL partial over the padded width (padded columns contribute
    # exactly 1 + 0 - 0 - 1 = 0).  Rows past the true batch (ragged last
    # block) carry undefined data; use a select, not a multiply, so a stray
    # inf/nan in a dead row cannot poison the sum.
    row = jax.lax.broadcasted_iota(jnp.int32, (tile_b, 1), 0) + i * tile_b
    kl_elems = 1.0 + sigma - mu * mu - std * std       # std*std == exp(sigma) (~1 ulp)
    kl_elems = jnp.where(row < batch, kl_elems, 0.0)
    kl_ref[...] = jnp.full((8, 128), -0.5 * jnp.sum(kl_elems), dtype=jnp.float32)

    # ---------------- Decoder ----------------
    d1 = jnp.dot(z, v1_ref[...], preferred_element_type=jnp.float32) + c1_ref[...]
    d1 = jnp.maximum(d1, 0.0)
    d2 = jnp.dot(d1, v2_ref[...], preferred_element_type=jnp.float32) + c2_ref[...]
    d2 = jnp.maximum(d2, 0.0)
    logits = jnp.dot(d2, v3_ref[...], preferred_element_type=jnp.float32) + c3_ref[...]
    # Exact sigmoid on the output path (approx reciprocal risks the 1e-5 check).
    out_ref[...] = pl.reciprocal(1.0 + jnp.exp(-logits), approx=False).astype(out_ref.dtype)


def prepare_params(params, latent_dims):
    """One-time host-side weight padding + mu/log-var head fusion.

    Hoisted out of the per-call path so vae_forward contains no XLA pad /
    concat ops.  Output-feature dims are padded to 128 lanes (zero padding is
    inert: relu(0)=0 and padded KL terms are exactly 0); contraction dims that
    meet streamed activations (x's D, the latent L) are kept natural.
    """
    Lp = _round_up(latent_dims, 128)
    D = params["w1"].shape[0]

    def pad2(a, r, c):
        return jnp.pad(a, ((0, r - a.shape[0]), (0, c - a.shape[1])))

    w1 = pad2(params["w1"], D, H1P);      b1 = pad2(params["b1"], 1, H1P)
    w2 = pad2(params["w2"], H1P, H2P);    b2 = pad2(params["b2"], 1, H2P)
    wmu = pad2(params["wmu"], H2P, Lp);   bmu = pad2(params["bmu"], 1, Lp)
    wsg = pad2(params["wsig"], H2P, Lp);  bsg = pad2(params["bsig"], 1, Lp)
    wh = jnp.concatenate([wmu, wsg], axis=1)          # (H2P, 2*Lp) fused head
    bh = jnp.concatenate([bmu, bsg], axis=1)          # (1,   2*Lp)
    v1 = pad2(params["v1"], latent_dims, H2P)         # natural L rows
    c1 = pad2(params["c1"], 1, H2P)
    v2 = pad2(params["v2"], H2P, H1P);    c2 = pad2(params["c2"], 1, H1P)
    v3 = pad2(params["v3"], H1P, D)                   # natural D output cols
    c3 = params["c3"]                                 # (1, D) natural
    return (w1, b1, w2, b2, wh, bh, v1, c1, v2, c2, v3, c3)


@functools.partial(jax.jit, static_argnames=("tile_b",))
def vae_forward(x, noise, weights, *, tile_b=1024):
    """x: [B, init_size] f32, noise: [B, latent] f32, weights: prepare_params output.

    Returns (reconstruction [B, init_size], kl scalar).
    tile_b: batch rows per grid step.  1024 is a good default on v6e/v7x
    (sweep 512–2048; keep <=1024 on v5e's smaller scoped-VMEM budget).
    """
    B, D = x.shape
    L = noise.shape[1]
    Lp = _round_up(L, 128)

    tb = _round_up(min(tile_b, _round_up(B, 8)), 8)
    n_tiles = pl.cdiv(B, tb)
    grid = (n_tiles,)

    def stream(cols):
        return pl.BlockSpec((tb, cols), lambda i: (i, 0))

    def resident(arr):
        return pl.BlockSpec(arr.shape, lambda i: (0, 0))   # stays in VMEM, no re-DMA

    in_specs = [stream(D), stream(L)] + [resident(w) for w in weights]

    kernel = functools.partial(
        vae_kernel, batch=B, tile_b=tb, latent=L, lat_pad=Lp)

    out, kl_parts = pl.pallas_call(
        kernel,
        grid=grid,
        out_shape=(
            jax.ShapeDtypeStruct((B, D), x.dtype),
            jax.ShapeDtypeStruct((n_tiles * 8, 128), jnp.float32),  # per-tile KL partials
        ),
        in_specs=in_specs,
        out_specs=(
            pl.BlockSpec((tb, D), lambda i: (i, 0)),
            pl.BlockSpec((8, 128), lambda i: (i, 0)),
        ),
        compiler_params=pltpu.CompilerParams(
            dimension_semantics=("parallel",),    # batch tiles independent (megacore)
            vmem_limit_bytes=32 * 1024 * 1024,    # headroom over v5e's 16 MiB default
        ),
    )(x, noise, *weights)

    kl = jnp.sum(kl_parts[::8, 0])   # row 0 of each (8,128) partial block
    return out, kl


def init_params(init_size, latent_dims, key):
    """Deterministic synthetic parameter init (PyTorch-style uniform fan-in)."""
    def linear(key, fan_in, fan_out):
        kw, kb = jax.random.split(key)
        bound = 1.0 / jnp.sqrt(fan_in)
        # stored transposed: [in, out]
        w = jax.random.uniform(kw, (fan_in, fan_out), jnp.float32, -bound, bound)
        b = jax.random.uniform(kb, (1, fan_out), jnp.float32, -bound, bound)
        return w, b

    keys = jax.random.split(key, 7)
    p = {}
    p["w1"], p["b1"] = linear(keys[0], init_size, 96)        # enc layer 1
    p["w2"], p["b2"] = linear(keys[1], 96, 64)                # enc layer 2
    p["wmu"], p["bmu"] = linear(keys[2], 64, latent_dims)     # mu head
    p["wsig"], p["bsig"] = linear(keys[3], 64, latent_dims)   # log-var head
    p["v1"], p["c1"] = linear(keys[4], latent_dims, 64)       # dec layer 1
    p["v2"], p["c2"] = linear(keys[5], 64, 96)                # dec layer 2
    p["v3"], p["c3"] = linear(keys[6], 96, init_size)         # dec layer 3
    return p


def _reference(x, noise, p):
    h1 = jnp.maximum(x @ p["w1"] + p["b1"], 0.0)
    h2 = jnp.maximum(h1 @ p["w2"] + p["b2"], 0.0)
    mu = h2 @ p["wmu"] + p["bmu"]
    sigma = h2 @ p["wsig"] + p["bsig"]
    z = mu + jnp.exp(0.5 * sigma) * noise
    d1 = jnp.maximum(z @ p["v1"] + p["c1"], 0.0)
    d2 = jnp.maximum(d1 @ p["v2"] + p["c2"], 0.0)
    out = 1.0 / (1.0 + jnp.exp(-(d2 @ p["v3"] + p["c3"])))
    kl = -0.5 * jnp.sum(1.0 + sigma - mu**2 - jnp.exp(sigma))
    return out, kl


if __name__ == "__main__":
    init_size = 128
    latent_dims = 16

    key = jax.random.PRNGKey(0)
    k_x, k_noise, k_params, k_x2, k_n2 = jax.random.split(key, 5)

    params = init_params(init_size, latent_dims, k_params)
    weights = prepare_params(params, latent_dims)   # one-time pad / fuse
    # TODO(synk): torch.randn_like sampling happens inside the PyTorch module;
    # here the reparameterization noise is a deterministic explicit input.

    # ---- small single-tile smoke test --------------------------------------
    batch = 8
    x = jax.random.uniform(k_x, (batch, init_size), jnp.float32)
    noise = jax.random.normal(k_noise, (batch, latent_dims), jnp.float32)
    recon, kl = vae_forward(x, noise, weights)
    jax.block_until_ready((recon, kl))

    ref_out, ref_kl = _reference(x, noise, params)
    assert recon.shape == (batch, init_size)
    assert jnp.allclose(recon, ref_out, atol=1e-5, rtol=1e-5)
    assert jnp.allclose(kl, ref_kl, atol=1e-3, rtol=1e-3)

    # ---- multi-tile grid with a ragged last block (pipeline path) ----------
    batch2 = 1000
    x2 = jax.random.uniform(k_x2, (batch2, init_size), jnp.float32)
    noise2 = jax.random.normal(k_n2, (batch2, latent_dims), jnp.float32)
    recon2, kl2 = vae_forward(x2, noise2, weights, tile_b=256)
    jax.block_until_ready((recon2, kl2))

    ref_out2, ref_kl2 = _reference(x2, noise2, params)
    assert recon2.shape == (batch2, init_size)
    assert jnp.allclose(recon2, ref_out2, atol=1e-4, rtol=1e-4)
    assert jnp.allclose(kl2, ref_kl2, atol=1e-2, rtol=1e-3)

    print("KERNEL_OK")
</pallas_src>

<mosaic_0001>
module attributes {stable_mosaic.version = 11 : i64} {
  func.func @vae_kernel(%arg0: i32, %arg1: memref<8x128xf32, #tpu.memory_space<vmem>>, %arg2: memref<8x16xf32, #tpu.memory_space<vmem>>, %arg3: memref<128x128xf32, #tpu.memory_space<vmem>>, %arg4: memref<1x128xf32, #tpu.memory_space<vmem>>, %arg5: memref<128x128xf32, #tpu.memory_space<vmem>>, %arg6: memref<1x128xf32, #tpu.memory_space<vmem>>, %arg7: memref<128x256xf32, #tpu.memory_space<vmem>>, %arg8: memref<1x256xf32, #tpu.memory_space<vmem>>, %arg9: memref<16x128xf32, #tpu.memory_space<vmem>>, %arg10: memref<1x128xf32, #tpu.memory_space<vmem>>, %arg11: memref<128x128xf32, #tpu.memory_space<vmem>>, %arg12: memref<1x128xf32, #tpu.memory_space<vmem>>, %arg13: memref<128x128xf32, #tpu.memory_space<vmem>>, %arg14: memref<1x128xf32, #tpu.memory_space<vmem>>, %arg15: memref<8x128xf32, #tpu.memory_space<vmem>>, %arg16: memref<8x128xf32, #tpu.memory_space<vmem>>) attributes {dimension_semantics = [#tpu.dimension_semantics<parallel>], iteration_bounds = array<i64: 1>, scalar_prefetch = 0 : i64, scratch_operands = 0 : i64, tpu.core_type = #tpu.core_type<tc>, window_params = [{transform_indices = @transform_0, window_bounds = array<i64: 8, 128>}, {transform_indices = @transform_1, window_bounds = array<i64: 8, 16>}, {pipeline_mode = #tpu.pipeline_mode<synchronous>, transform_indices = @transform_2, window_bounds = array<i64: 128, 128>}, {pipeline_mode = #tpu.pipeline_mode<synchronous>, transform_indices = @transform_3, window_bounds = array<i64: 1, 128>}, {pipeline_mode = #tpu.pipeline_mode<synchronous>, transform_indices = @transform_4, window_bounds = array<i64: 128, 128>}, {pipeline_mode = #tpu.pipeline_mode<synchronous>, transform_indices = @transform_5, window_bounds = array<i64: 1, 128>}, {pipeline_mode = #tpu.pipeline_mode<synchronous>, transform_indices = @transform_6, window_bounds = array<i64: 128, 256>}, {pipeline_mode = #tpu.pipeline_mode<synchronous>, transform_indices = @transform_7, window_bounds = array<i64: 1, 256>}, {pipeline_mode = #tpu.pipeline_mode<synchronous>, transform_indices = @transform_8, window_bounds = array<i64: 16, 128>}, {pipeline_mode = #tpu.pipeline_mode<synchronous>, transform_indices = @transform_9, window_bounds = array<i64: 1, 128>}, {pipeline_mode = #tpu.pipeline_mode<synchronous>, transform_indices = @transform_10, window_bounds = array<i64: 128, 128>}, {pipeline_mode = #tpu.pipeline_mode<synchronous>, transform_indices = @transform_11, window_bounds = array<i64: 1, 128>}, {pipeline_mode = #tpu.pipeline_mode<synchronous>, transform_indices = @transform_12, window_bounds = array<i64: 128, 128>}, {pipeline_mode = #tpu.pipeline_mode<synchronous>, transform_indices = @transform_13, window_bounds = array<i64: 1, 128>}, {transform_indices = @transform_14, window_bounds = array<i64: 8, 128>}, {transform_indices = @transform_15, window_bounds = array<i64: 8, 128>}]} {
    %c0 = arith.constant 0 : index
    %c0_0 = arith.constant 0 : index
    %0 = vector.load %arg1[%c0, %c0_0] : memref<8x128xf32, #tpu.memory_space<vmem>>, vector<8x128xf32>
    %c0_1 = arith.constant 0 : index
    %c0_2 = arith.constant 0 : index
    %1 = vector.load %arg3[%c0_1, %c0_2] : memref<128x128xf32, #tpu.memory_space<vmem>>, vector<128x128xf32>
    %cst = arith.constant dense<0.000000e+00> : vector<8x128xf32>
    %2 = tpu.matmul %0, %1, %cst {dimension_numbers = #tpu.dot_dimension_numbers<[1], [0], [0], [1], [0, 0, 1, 1], [], []>} : vector<8x128xf32>, vector<128x128xf32>, vector<8x128xf32> -> vector<8x128xf32>
    %c0_3 = arith.constant 0 : index
    %c0_4 = arith.constant 0 : index
    %3 = vector.load %arg4[%c0_3, %c0_4] : memref<1x128xf32, #tpu.memory_space<vmem>>, vector<1x128xf32>
    %4 = vector.broadcast %3 : vector<1x128xf32> to vector<8x128xf32>
    %5 = arith.addf %2, %4 : vector<8x128xf32>
    %cst_5 = arith.constant 0.000000e+00 : f32
    %6 = vector.broadcast %cst_5 : f32 to vector<8x128xf32>
    %7 = arith.maximumf %5, %6 : vector<8x128xf32>
    %c0_6 = arith.constant 0 : index
    %c0_7 = arith.constant 0 : index
    %8 = vector.load %arg5[%c0_6, %c0_7] : memref<128x128xf32, #tpu.memory_space<vmem>>, vector<128x128xf32>
    %cst_8 = arith.constant dense<0.000000e+00> : vector<8x128xf32>
    %9 = tpu.matmul %7, %8, %cst_8 {dimension_numbers = #tpu.dot_dimension_numbers<[1], [0], [0], [1], [0, 0, 1, 1], [], []>} : vector<8x128xf32>, vector<128x128xf32>, vector<8x128xf32> -> vector<8x128xf32>
    %c0_9 = arith.constant 0 : index
    %c0_10 = arith.constant 0 : index
    %10 = vector.load %arg6[%c0_9, %c0_10] : memref<1x128xf32, #tpu.memory_space<vmem>>, vector<1x128xf32>
    %11 = vector.broadcast %10 : vector<1x128xf32> to vector<8x128xf32>
    %12 = arith.addf %9, %11 : vector<8x128xf32>
    %cst_11 = arith.constant 0.000000e+00 : f32
    %13 = vector.broadcast %cst_11 : f32 to vector<8x128xf32>
    %14 = arith.maximumf %12, %13 : vector<8x128xf32>
    %c0_12 = arith.constant 0 : index
    %c0_13 = arith.constant 0 : index
    %15 = vector.load %arg7[%c0_12, %c0_13] : memref<128x256xf32, #tpu.memory_space<vmem>>, vector<128x256xf32>
    %cst_14 = arith.constant dense<0.000000e+00> : vector<8x256xf32>
    %16 = tpu.matmul %14, %15, %cst_14 {dimension_numbers = #tpu.dot_dimension_numbers<[1], [0], [0], [1], [0, 0, 1, 1], [], []>} : vector<8x128xf32>, vector<128x256xf32>, vector<8x256xf32> -> vector<8x256xf32>
    %c0_15 = arith.constant 0 : index
    %c0_16 = arith.constant 0 : index
    %17 = vector.load %arg8[%c0_15, %c0_16] : memref<1x256xf32, #tpu.memory_space<vmem>>, vector<1x256xf32>
    %18 = vector.broadcast %17 : vector<1x256xf32> to vector<8x256xf32>
    %19 = arith.addf %16, %18 : vector<8x256xf32>
    %20 = vector.extract_strided_slice %19 {offsets = [0, 0], sizes = [8, 128], strides = [1, 1]} : vector<8x256xf32> to vector<8x128xf32>
    %21 = vector.extract_strided_slice %19 {offsets = [0, 128], sizes = [8, 128], strides = [1, 1]} : vector<8x256xf32> to vector<8x128xf32>
    %cst_17 = arith.constant 5.000000e-01 : f32
    %22 = vector.broadcast %cst_17 : f32 to vector<8x128xf32>
    %23 = arith.mulf %22, %21 : vector<8x128xf32>
    %24 = math.exp %23 : vector<8x128xf32>
    %25 = vector.extract_strided_slice %20 {offsets = [0, 0], sizes = [8, 16], strides = [1, 1]} : vector<8x128xf32> to vector<8x16xf32>
    %26 = vector.extract_strided_slice %24 {offsets = [0, 0], sizes = [8, 16], strides = [1, 1]} : vector<8x128xf32> to vector<8x16xf32>
    %c0_18 = arith.constant 0 : index
    %c0_19 = arith.constant 0 : index
    %27 = vector.load %arg2[%c0_18, %c0_19] : memref<8x16xf32, #tpu.memory_space<vmem>>, vector<8x16xf32>
    %28 = arith.mulf %26, %27 : vector<8x16xf32>
    %29 = arith.addf %25, %28 : vector<8x16xf32>
    %30 = tpu.iota {dimensions = array<i32: 0>} : vector<8x1xi32>
    %c8_i32 = arith.constant 8 : i32
    %31 = arith.muli %arg0, %c8_i32 : i32
    %32 = vector.broadcast %31 : i32 to vector<8x1xi32>
    %33 = arith.addi %30, %32 : vector<8x1xi32>
    %cst_20 = arith.constant 1.000000e+00 : f32
    %34 = vector.broadcast %cst_20 : f32 to vector<8x128xf32>
    %35 = arith.addf %34, %21 : vector<8x128xf32>
    %36 = arith.mulf %20, %20 : vector<8x128xf32>
    %37 = arith.subf %35, %36 : vector<8x128xf32>
    %38 = arith.mulf %24, %24 : vector<8x128xf32>
    %39 = arith.subf %37, %38 : vector<8x128xf32>
    %c8_i32_21 = arith.constant 8 : i32
    %40 = vector.broadcast %c8_i32_21 : i32 to vector<8x1xi32>
    %41 = arith.cmpi slt, %33, %40 : vector<8x1xi32>
    %cst_22 = arith.constant 0.000000e+00 : f32
    %42 = vector.shape_cast %41 : vector<8x1xi1> to vector<8x1xi1>
    %43 = vector.broadcast %42 : vector<8x1xi1> to vector<8x128xi1>
    %44 = vector.broadcast %cst_22 : f32 to vector<8x128xf32>
    %45 = arith.select %43, %39, %44 : vector<8x128xi1>, vector<8x128xf32>
    %46 = vector.shape_cast %45 : vector<8x128xf32> to vector<1x8x128xf32>
    %cst_23 = arith.constant dense<0.000000e+00> : vector<1xf32>
    %47 = vector.multi_reduction <add>, %46, %cst_23 [1, 2] : vector<1x8x128xf32> to vector<1xf32>
    %48 = vector.shape_cast %47 : vector<1xf32> to vector<1x1x1xf32>
    %49 = vector.extract %48[0, 0, 0] : f32 from vector<1x1x1xf32>
    %cst_24 = arith.constant -5.000000e-01 : f32
    %50 = arith.mulf %cst_24, %49 : f32
    %51 = vector.broadcast %50 : f32 to vector<8x128xf32>
    %c0_25 = arith.constant 0 : index
    %c0_26 = arith.constant 0 : index
    %52 = vector.load %arg16[%c0_25, %c0_26] : memref<8x128xf32, #tpu.memory_space<vmem>>, vector<8x128xf32>
    tpu.vector_store %arg16[%c0_25, %c0_26], %51 {strides = array<i32>} : memref<8x128xf32, #tpu.memory_space<vmem>>, vector<8x128xf32>,
    %c0_27 = arith.constant 0 : index
    %c0_28 = arith.constant 0 : index
    %53 = vector.load %arg9[%c0_27, %c0_28] : memref<16x128xf32, #tpu.memory_space<vmem>>, vector<16x128xf32>
    %cst_29 = arith.constant dense<0.000000e+00> : vector<8x128xf32>
    %54 = tpu.matmul %29, %53, %cst_29 {dimension_numbers = #tpu.dot_dimension_numbers<[1], [0], [0], [1], [0, 0, 1, 1], [], []>} : vector<8x16xf32>, vector<16x128xf32>, vector<8x128xf32> -> vector<8x128xf32>
    %c0_30 = arith.constant 0 : index
    %c0_31 = arith.constant 0 : index
    %55 = vector.load %arg10[%c0_30, %c0_31] : memref<1x128xf32, #tpu.memory_space<vmem>>, vector<1x128xf32>
    %56 = vector.broadcast %55 : vector<1x128xf32> to vector<8x128xf32>
    %57 = arith.addf %54, %56 : vector<8x128xf32>
    %cst_32 = arith.constant 0.000000e+00 : f32
    %58 = vector.broadcast %cst_32 : f32 to vector<8x128xf32>
    %59 = arith.maximumf %57, %58 : vector<8x128xf32>
    %c0_33 = arith.constant 0 : index
    %c0_34 = arith.constant 0 : index
    %60 = vector.load %arg11[%c0_33, %c0_34] : memref<128x128xf32, #tpu.memory_space<vmem>>, vector<128x128xf32>
    %cst_35 = arith.constant dense<0.000000e+00> : vector<8x128xf32>
    %61 = tpu.matmul %59, %60, %cst_35 {dimension_numbers = #tpu.dot_dimension_numbers<[1], [0], [0], [1], [0, 0, 1, 1], [], []>} : vector<8x128xf32>, vector<128x128xf32>, vector<8x128xf32> -> vector<8x128xf32>
    %c0_36 = arith.constant 0 : index
    %c0_37 = arith.constant 0 : index
    %62 = vector.load %arg12[%c0_36, %c0_37] : memref<1x128xf32, #tpu.memory_space<vmem>>, vector<1x128xf32>
    %63 = vector.broadcast %62 : vector<1x128xf32> to vector<8x128xf32>
    %64 = arith.addf %61, %63 : vector<8x128xf32>
    %cst_38 = arith.constant 0.000000e+00 : f32
    %65 = vector.broadcast %cst_38 : f32 to vector<8x128xf32>
    %66 = arith.maximumf %64, %65 : vector<8x128xf32>
    %c0_39 = arith.constant 0 : index
    %c0_40 = arith.constant 0 : index
    %67 = vector.load %arg13[%c0_39, %c0_40] : memref<128x128xf32, #tpu.memory_space<vmem>>, vector<128x128xf32>
    %cst_41 = arith.constant dense<0.000000e+00> : vector<8x128xf32>
    %68 = tpu.matmul %66, %67, %cst_41 {dimension_numbers = #tpu.dot_dimension_numbers<[1], [0], [0], [1], [0, 0, 1, 1], [], []>} : vector<8x128xf32>, vector<128x128xf32>, vector<8x128xf32> -> vector<8x128xf32>
    %c0_42 = arith.constant 0 : index
    %c0_43 = arith.constant 0 : index
    %69 = vector.load %arg14[%c0_42, %c0_43] : memref<1x128xf32, #tpu.memory_space<vmem>>, vector<1x128xf32>
    %70 = vector.broadcast %69 : vector<1x128xf32> to vector<8x128xf32>
    %71 = arith.addf %68, %70 : vector<8x128xf32>
    %cst_44 = arith.constant 0.000000e+00 : f32
    %72 = vector.broadcast %cst_44 : f32 to vector<8x128xf32>
    %73 = arith.subf %72, %71 : vector<8x128xf32>
    %74 = math.exp %73 : vector<8x128xf32>
    %cst_45 = arith.constant 1.000000e+00 : f32
    %75 = vector.broadcast %cst_45 : f32 to vector<8x128xf32>
    %76 = arith.addf %75, %74 : vector<8x128xf32>
    %77 = tpu.reciprocal %76 : vector<8x128xf32> -> vector<8x128xf32>
    %c0_46 = arith.constant 0 : index
    %c0_47 = arith.constant 0 : index
    %78 = vector.load %arg15[%c0_46, %c0_47] : memref<8x128xf32, #tpu.memory_space<vmem>>, vector<8x128xf32>
    tpu.vector_store %arg15[%c0_46, %c0_47], %77 {strides = array<i32>} : memref<8x128xf32, #tpu.memory_space<vmem>>, vector<8x128xf32>,
    return
  }
  func.func @transform_0(%arg0: i32) -> (i32, i32) {
    %c0_i32 = arith.constant 0 : i32
    %c0_i32_0 = arith.constant 0 : i32
    return %arg0, %c0_i32 : i32, i32
  }
  func.func @transform_1(%arg0: i32) -> (i32, i32) {
    %c0_i32 = arith.constant 0 : i32
    %c0_i32_0 = arith.constant 0 : i32
    return %arg0, %c0_i32 : i32, i32
  }
  func.func @transform_2(%arg0: i32) -> (i32, i32) {
    %c0_i32 = arith.constant 0 : i32
    %c0_i32_0 = arith.constant 0 : i32
    %c0_i32_1 = arith.constant 0 : i32
    return %c0_i32, %c0_i32_0 : i32, i32
  }
  func.func @transform_3(%arg0: i32) -> (i32, i32) {
    %c0_i32 = arith.constant 0 : i32
    %c0_i32_0 = arith.constant 0 : i32
    %c0_i32_1 = arith.constant 0 : i32
    return %c0_i32, %c0_i32_0 : i32, i32
  }
  func.func @transform_4(%arg0: i32) -> (i32, i32) {
    %c0_i32 = arith.constant 0 : i32
    %c0_i32_0 = arith.constant 0 : i32
    %c0_i32_1 = arith.constant 0 : i32
    return %c0_i32, %c0_i32_0 : i32, i32
  }
  func.func @transform_5(%arg0: i32) -> (i32, i32) {
    %c0_i32 = arith.constant 0 : i32
    %c0_i32_0 = arith.constant 0 : i32
    %c0_i32_1 = arith.constant 0 : i32
    return %c0_i32, %c0_i32_0 : i32, i32
  }
  func.func @transform_6(%arg0: i32) -> (i32, i32) {
    %c0_i32 = arith.constant 0 : i32
    %c0_i32_0 = arith.constant 0 : i32
    %c0_i32_1 = arith.constant 0 : i32
    return %c0_i32, %c0_i32_0 : i32, i32
  }
  func.func @transform_7(%arg0: i32) -> (i32, i32) {
    %c0_i32 = arith.constant 0 : i32
    %c0_i32_0 = arith.constant 0 : i32
    %c0_i32_1 = arith.constant 0 : i32
    return %c0_i32, %c0_i32_0 : i32, i32
  }
  func.func @transform_8(%arg0: i32) -> (i32, i32) {
    %c0_i32 = arith.constant 0 : i32
    %c0_i32_0 = arith.constant 0 : i32
    %c0_i32_1 = arith.constant 0 : i32
    return %c0_i32, %c0_i32_0 : i32, i32
  }
  func.func @transform_9(%arg0: i32) -> (i32, i32) {
    %c0_i32 = arith.constant 0 : i32
    %c0_i32_0 = arith.constant 0 : i32
    %c0_i32_1 = arith.constant 0 : i32
    return %c0_i32, %c0_i32_0 : i32, i32
  }
  func.func @transform_10(%arg0: i32) -> (i32, i32) {
    %c0_i32 = arith.constant 0 : i32
    %c0_i32_0 = arith.constant 0 : i32
    %c0_i32_1 = arith.constant 0 : i32
    return %c0_i32, %c0_i32_0 : i32, i32
  }
  func.func @transform_11(%arg0: i32) -> (i32, i32) {
    %c0_i32 = arith.constant 0 : i32
    %c0_i32_0 = arith.constant 0 : i32
    %c0_i32_1 = arith.constant 0 : i32
    return %c0_i32, %c0_i32_0 : i32, i32
  }
  func.func @transform_12(%arg0: i32) -> (i32, i32) {
    %c0_i32 = arith.constant 0 : i32
    %c0_i32_0 = arith.constant 0 : i32
    %c0_i32_1 = arith.constant 0 : i32
    return %c0_i32, %c0_i32_0 : i32, i32
  }
  func.func @transform_13(%arg0: i32) -> (i32, i32) {
    %c0_i32 = arith.constant 0 : i32
    %c0_i32_0 = arith.constant 0 : i32
    %c0_i32_1 = arith.constant 0 : i32
    return %c0_i32, %c0_i32_0 : i32, i32
  }
  func.func @transform_14(%arg0: i32) -> (i32, i32) {
    %c0_i32 = arith.constant 0 : i32
    %c0_i32_0 = arith.constant 0 : i32
    return %arg0, %c0_i32 : i32, i32
  }
  func.func @transform_15(%arg0: i32) -> (i32, i32) {
    %c0_i32 = arith.constant 0 : i32
    %c0_i32_0 = arith.constant 0 : i32
    return %arg0, %c0_i32 : i32, i32
  }
}

</mosaic_0001>

<llo_original>
// kernel: vae_forward.1
$region0: #{vae_forward.1}
  #allocation0 [shape = 'u32[]', space=smem, size = 0x4, offset = 0x4, fixed_abs, tag = 'smem constant byte address 0x4 - core index']
  #allocation1 [shape = 'u32[72,128]{1,0:T(1,128)}', space=vmem, size = 0x9000, scoped, tag = 'internal scratch']
  %s0 = inlined_call_operand.vmem [shape: f32[8,128], index: 0, kind: input, shape index: {}]
  %s1 = inlined_call_operand.hbm [shape: f32[8,16], index: 1, kind: input, shape index: {}]
  %s2 = inlined_call_operand.hbm [shape: f32[128,128], index: 2, kind: input, shape index: {}]
  %s3 = inlined_call_operand.vmem [shape: f32[1,128], index: 3, kind: input, shape index: {}]
  %s4 = inlined_call_operand.hbm [shape: f32[128,128], index: 4, kind: input, shape index: {}]
  %s5 = inlined_call_operand.vmem [shape: f32[1,128], index: 5, kind: input, shape index: {}]
  %s6 = inlined_call_operand.hbm [shape: f32[128,256], index: 6, kind: input, shape index: {}]
  %s7 = inlined_call_operand.vmem [shape: f32[1,256], index: 7, kind: input, shape index: {}]
  %s8 = inlined_call_operand.hbm [shape: f32[16,128], index: 8, kind: input, shape index: {}]
  %s9 = inlined_call_operand.hbm [shape: f32[1,128], index: 9, kind: input, shape index: {}]
  %s10 = inlined_call_operand.hbm [shape: f32[128,128], index: 10, kind: input, shape index: {}]
  %s11 = inlined_call_operand.hbm [shape: f32[1,128], index: 11, kind: input, shape index: {}]
  %s12 = inlined_call_operand.hbm [shape: f32[128,128], index: 12, kind: input, shape index: {}]
  %s13 = inlined_call_operand.hbm [shape: f32[1,128], index: 13, kind: input, shape index: {}]
  %s14 = inlined_call_operand.hbm [shape: f32[8,128], index: 14, kind: output, shape index: {0}]
  %s15 = inlined_call_operand.vmem [shape: f32[8,128], index: 15, kind: output, shape index: {1}]
  %16 = xla_tuple %s14, %s15
  %s17 = sld [smem:[#allocation0]]
  $region114: #{vae_forward.1} parent=0
    _
  %s19 = ssub.s32 1, %s17
  %s20 = scalar_select 0, %s19, %s17
  $region1: #{vae_forward.1} parent=0
    #allocation2 [shape = 'u8[4096]{0}', space=vmem, size = 0x1000, scoped, tag = 'input window, operand 1, single buffered']
    #allocation3 [shape = 's32[1]{0}', space=sflag, size = 0x4, scoped, tag = 'scoped memory for vae_forward.1']
    #allocation4 [shape = 's32[1]{0}', space=sflag, size = 0x4, scoped, tag = 'scoped memory for vae_forward.1']
    #allocation5 [shape = 'u8[65536]{0}', space=vmem, size = 0x10000, scoped, tag = 'input window, operand 2, single buffered']
    #allocation6 [shape = 's32[1]{0}', space=sflag, size = 0x4, scoped, tag = 'scoped memory for vae_forward.1']
    #allocation7 [shape = 'u8[65536]{0}', space=vmem, size = 0x10000, scoped, tag = 'input window, operand 4, single buffered']
    #allocation8 [shape = 'u8[131072]{0}', space=vmem, size = 0x20000, scoped, tag = 'input window, operand 6, single buffered']
    #allocation9 [shape = 's32[1]{0}', space=sflag, size = 0x4, scoped, tag = 'scoped memory for vae_forward.1']
    #allocation10 [shape = 'u8[8192]{0}', space=vmem, size = 0x2000, scoped, tag = 'input window, operand 8, single buffered']
    #allocation11 [shape = 'u8[512]{0}', space=vmem, size = 0x400, scoped, tag = 'input window, operand 9, single buffered']
    #allocation12 [shape = 's32[1]{0}', space=sflag, size = 0x4, scoped, tag = 'scoped memory for vae_forward.1']
    #allocation13 [shape = 'u8[65536]{0}', space=vmem, size = 0x10000, scoped, tag = 'input window, operand 10, single buffered']
    #allocation14 [shape = 'u8[512]{0}', space=vmem, size = 0x400, scoped, tag = 'input window, operand 11, single buffered']
    #allocation15 [shape = 's32[1]{0}', space=sflag, size = 0x4, scoped, tag = 'scoped memory for vae_forward.1']
    #allocation16 [shape = 'u8[65536]{0}', space=vmem, size = 0x10000, scoped, tag = 'input window, operand 12, single buffered']
    #allocation17 [shape = 'u8[512]{0}', space=vmem, size = 0x400, scoped, tag = 'input window, operand 13, single buffered']
    #allocation18 [shape = 's32[1]{0}', space=sflag, size = 0x4, scoped, tag = 'scoped memory for vae_forward.1']
    #allocation19 [shape = 'u8[4096]{0}', space=vmem, size = 0x1000, scoped, tag = 'output window, operand 0, single buffered']
    %21 = vsyncpa [#allocation3], 0
    %22 = vsyncpa [#allocation6], 0
    %23 = vsyncpa [#allocation9], 0
    %24 = vsyncpa [#allocation12], 0
    %25 = vsyncpa [#allocation15], 0
    %26 = vsyncpa [#allocation18], 0
    %27 = vsyncpa [#allocation4], 0
    // Predicated region
    $region2: #{vae_forward.1} parent=1 // pred_check
      _
    $region3: #{vae_forward.1} parent=1 // pred_check_branch
      %29 = sbr.rel (0) target = $region5
    $region4: #{vae_forward.1} parent=1 // pred_region
      _
    $region5: #{vae_forward.1} parent=1 // pred_fallthru
      _
    // Predicated region
    $region6: #{vae_forward.1} parent=1 // pred_check
      _
    $region7: #{vae_forward.1} parent=1 // pred_check_branch
      %31 = sbr.rel (0) target = $region9
    $region8: #{vae_forward.1} parent=1 // pred_region
      %33 = vsyncadd [#allocation3], 0
      %s35 = sshll.u32 %s1, 4
      %s36 = int_to_ptr.hbm [resolvable:$true] %s35
      %s37 = sshll.u32 [#allocation2], 4
      %s38 = int_to_ptr.vmem [resolvable:$true] %s37
      %40 = dma.hbm_to_vmem [thread:$0]  %s36, 128, %s38, [#allocation3]
    $region9: #{vae_forward.1} parent=1 // pred_fallthru
      _
    // Predicated region
    $region10: #{vae_forward.1} parent=1 // pred_check
      _
    $region11: #{vae_forward.1} parent=1 // pred_check_branch
      %42 = sbr.rel (0) target = $region13
    $region12: #{vae_forward.1} parent=1 // pred_region
      %44 = vsyncadd [#allocation6], 0
      %s45 = sshll.u32 %s2, 4
      %s46 = int_to_ptr.hbm [resolvable:$true] %s45
      %s47 = sshll.u32 [#allocation5], 4
      %s48 = int_to_ptr.vmem [resolvable:$true] %s47
      %53 = dma.hbm_to_vmem [thread:$0]  %s46, 2048, %s48, [#allocation6], 128, 128, 8
    $region13: #{vae_forward.1} parent=1 // pred_fallthru
      _
    // Predicated region
    $region14: #{vae_forward.1} parent=1 // pred_check
      _
    $region15: #{vae_forward.1} parent=1 // pred_check_branch
      %55 = sbr.rel (0) target = $region17
    $region16: #{vae_forward.1} parent=1 // pred_region
      _
    $region17: #{vae_forward.1} parent=1 // pred_fallthru
      _
    // Predicated region
    $region18: #{vae_forward.1} parent=1 // pred_check
      _
    $region19: #{vae_forward.1} parent=1 // pred_check_branch
      %57 = sbr.rel (0) target = $region21
    $region20: #{vae_forward.1} parent=1 // pred_region
      %59 = vsyncadd [#allocation6], 0
      %s60 = sshll.u32 %s4, 4
      %s61 = int_to_ptr.hbm [resolvable:$true] %s60
      %s62 = sshll.u32 [#allocation7], 4
      %s63 = int_to_ptr.vmem [resolvable:$true] %s62
      %68 = dma.hbm_to_vmem [thread:$0]  %s61, 2048, %s63, [#allocation6], 128, 128, 8
    $region21: #{vae_forward.1} parent=1 // pred_fallthru
      _
    // Predicated region
    $region22: #{vae_forward.1} parent=1 // pred_check
      _
    $region23: #{vae_forward.1} parent=1 // pred_check_branch
      %70 = sbr.rel (0) target = $region25
    $region24: #{vae_forward.1} parent=1 // pred_region
      _
    $region25: #{vae_forward.1} parent=1 // pred_fallthru
      _
    // Predicated region
    $region26: #{vae_forward.1} parent=1 // pred_check
      _
    $region27: #{vae_forward.1} parent=1 // pred_check_branch
      %72 = sbr.rel (0) target = $region29
    $region28: #{vae_forward.1} parent=1 // pred_region
      %74 = vsyncadd [#allocation9], 0
      %s75 = sshll.u32 %s6, 4
      %s76 = int_to_ptr.hbm [resolvable:$true] %s75
      %s77 = sshll.u32 [#allocation8], 4
      %s78 = int_to_ptr.vmem [resolvable:$true] %s77
      %83 = dma.hbm_to_vmem [thread:$0]  %s76, 4096, %s78, [#allocation9], 256, 256, 16
    $region29: #{vae_forward.1} parent=1 // pred_fallthru
      _
    // Predicated region
    $region30: #{vae_forward.1} parent=1 // pred_check
      _
    $region31: #{vae_forward.1} parent=1 // pred_check_branch
      %85 = sbr.rel (0) target = $region33
    $region32: #{vae_forward.1} parent=1 // pred_region
      _
    $region33: #{vae_forward.1} parent=1 // pred_fallthru
      _
    // Predicated region
    $region34: #{vae_forward.1} parent=1 // pred_check
      _
    $region35: #{vae_forward.1} parent=1 // pred_check_branch
      %87 = sbr.rel (0) target = $region37
    $region36: #{vae_forward.1} parent=1 // pred_region
      %89 = vsyncadd [#allocation9], 0
      %s90 = sshll.u32 %s8, 4
      %s91 = int_to_ptr.hbm [resolvable:$true] %s90
      %s92 = sshll.u32 [#allocation10], 4
      %s93 = int_to_ptr.vmem [resolvable:$true] %s92
      %98 = dma.hbm_to_vmem [thread:$0]  %s91, 256, %s93, [#allocation9], 128, 128, 8
    $region37: #{vae_forward.1} parent=1 // pred_fallthru
      _
    // Predicated region
    $region38: #{vae_forward.1} parent=1 // pred_check
      _
    $region39: #{vae_forward.1} parent=1 // pred_check_branch
      %100 = sbr.rel (0) target = $region41
    $region40: #{vae_forward.1} parent=1 // pred_region
      %102 = vsyncadd [#allocation12], 0
      %s104 = sshll.u32 %s9, 4
      %s105 = int_to_ptr.hbm [resolvable:$true] %s104
      %s106 = sshll.u32 [#allocation11], 4
      %s107 = int_to_ptr.vmem [resolvable:$true] %s106
      %109 = dma.hbm_to_vmem [thread:$0]  %s105, 16, %s107, [#allocation12]
    $region41: #{vae_forward.1} parent=1 // pred_fallthru
      _
    // Predicated region
    $region42: #{vae_forward.1} parent=1 // pred_check
      _
    $region43: #{vae_forward.1} parent=1 // pred_check_branch
      %111 = sbr.rel (0) target = $region45
    $region44: #{vae_forward.1} parent=1 // pred_region
      %113 = vsyncadd [#allocation12], 0
      %s114 = sshll.u32 %s10, 4
      %s115 = int_to_ptr.hbm [resolvable:$true] %s114
      %s116 = sshll.u32 [#allocation13], 4
      %s117 = int_to_ptr.vmem [resolvable:$true] %s116
      %122 = dma.hbm_to_vmem [thread:$0]  %s115, 2048, %s117, [#allocation12], 128, 128, 8
    $region45: #{vae_forward.1} parent=1 // pred_fallthru
      _
    // Predicated region
    $region46: #{vae_forward.1} parent=1 // pred_check
      _
    $region47: #{vae_forward.1} parent=1 // pred_check_branch
      %124 = sbr.rel (0) target = $region49
    $region48: #{vae_forward.1} parent=1 // pred_region
      %126 = vsyncadd [#allocation15], 0
      %s128 = sshll.u32 %s11, 4
      %s129 = int_to_ptr.hbm [resolvable:$true] %s128
      %s130 = sshll.u32 [#allocation14], 4
      %s131 = int_to_ptr.vmem [resolvable:$true] %s130
      %133 = dma.hbm_to_vmem [thread:$0]  %s129, 16, %s131, [#allocation15]
    $region49: #{vae_forward.1} parent=1 // pred_fallthru
      _
    // Predicated region
    $region50: #{vae_forward.1} parent=1 // pred_check
      _
    $region51: #{vae_forward.1} parent=1 // pred_check_branch
      %135 = sbr.rel (0) target = $region53
    $region52: #{vae_forward.1} parent=1 // pred_region
      %137 = vsyncadd [#allocation15], 0
      %s138 = sshll.u32 %s12, 4
      %s139 = int_to_ptr.hbm [resolvable:$true] %s138
      %s140 = sshll.u32 [#allocation16], 4
      %s141 = int_to_ptr.vmem [resolvable:$true] %s140
      %146 = dma.hbm_to_vmem [thread:$0]  %s139, 2048, %s141, [#allocation15], 128, 128, 8
    $region53: #{vae_forward.1} parent=1 // pred_fallthru
      _
    // Predicated region
    $region54: #{vae_forward.1} parent=1 // pred_check
      _
    $region55: #{vae_forward.1} parent=1 // pred_check_branch
      %148 = sbr.rel (0) target = $region57
    $region56: #{vae_forward.1} parent=1 // pred_region
      %150 = vsyncadd [#allocation18], 0
      %s152 = sshll.u32 %s13, 4
      %s153 = int_to_ptr.hbm [resolvable:$true] %s152
      %s154 = sshll.u32 [#allocation17], 4
      %s155 = int_to_ptr.vmem [resolvable:$true] %s154
      %157 = dma.hbm_to_vmem [thread:$0]  %s153, 16, %s155, [#allocation18]
    $region57: #{vae_forward.1} parent=1 // pred_fallthru
      _
    // Predicated region
    $region58: #{vae_forward.1} parent=1 // pred_check
      _
    $region59: #{vae_forward.1} parent=1 // pred_check_branch
      %159 = sbr.rel (0) target = $region61
    $region60: #{vae_forward.1} parent=1 // pred_region
      %161 = dma.done [#allocation3], 128
    $region61: #{vae_forward.1} parent=1 // pred_fallthru
      _
    // Predicated region
    $region62: #{vae_forward.1} parent=1 // pred_check
      _
    $region63: #{vae_forward.1} parent=1 // pred_check_branch
      %163 = sbr.rel (0) target = $region65
    $region64: #{vae_forward.1} parent=1 // pred_region
      %165 = dma.done [#allocation6], 2048
    $region65: #{vae_forward.1} parent=1 // pred_fallthru
      _
    // Predicated region
    $region66: #{vae_forward.1} parent=1 // pred_check
      _
    $region67: #{vae_forward.1} parent=1 // pred_check_branch
      %167 = sbr.rel (0) target = $region69
    $region68: #{vae_forward.1} parent=1 // pred_region
      %169 = dma.done [#allocation6], 2048
    $region69: #{vae_forward.1} parent=1 // pred_fallthru
      _
    // Predicated region
    $region70: #{vae_forward.1} parent=1 // pred_check
      _
    $region71: #{vae_forward.1} parent=1 // pred_check_branch
      %171 = sbr.rel (0) target = $region73
    $region72: #{vae_forward.1} parent=1 // pred_region
      %173 = dma.done [#allocation9], 4096
    $region73: #{vae_forward.1} parent=1 // pred_fallthru
      _
    // Predicated region
    $region74: #{vae_forward.1} parent=1 // pred_check
      _
    $region75: #{vae_forward.1} parent=1 // pred_check_branch
      %175 = sbr.rel (0) target = $region77
    $region76: #{vae_forward.1} parent=1 // pred_region
      %177 = dma.done [#allocation9], 256
    $region77: #{vae_forward.1} parent=1 // pred_fallthru
      _
    // Predicated region
    $region78: #{vae_forward.1} parent=1 // pred_check
      _
    $region79: #{vae_forward.1} parent=1 // pred_check_branch
      %179 = sbr.rel (0) target = $region81
    $region80: #{vae_forward.1} parent=1 // pred_region
      %181 = dma.done [#allocation12], 16
    $region81: #{vae_forward.1} parent=1 // pred_fallthru
      _
    // Predicated region
    $region82: #{vae_forward.1} parent=1 // pred_check
      _
    $region83: #{vae_forward.1} parent=1 // pred_check_branch
      %183 = sbr.rel (0) target = $region85
    $region84: #{vae_forward.1} parent=1 // pred_region
      %185 = dma.done [#allocation12], 2048
    $region85: #{vae_forward.1} parent=1 // pred_fallthru
      _
    // Predicated region
    $region86: #{vae_forward.1} parent=1 // pred_check
      _
    $region87: #{vae_forward.1} parent=1 // pred_check_branch
      %187 = sbr.rel (0) target = $region89
    $region88: #{vae_forward.1} parent=1 // pred_region
      %189 = dma.done [#allocation15], 16
    $region89: #{vae_forward.1} parent=1 // pred_fallthru
      _
    // Predicated region
    $region90: #{vae_forward.1} parent=1 // pred_check
      _
    $region91: #{vae_forward.1} parent=1 // pred_check_branch
      %191 = sbr.rel (0) target = $region93
    $region92: #{vae_forward.1} parent=1 // pred_region
      %193 = dma.done [#allocation15], 2048
    $region93: #{vae_forward.1} parent=1 // pred_fallthru
      _
    // Predicated region
    $region94: #{vae_forward.1} parent=1 // pred_check
      _
    $region95: #{vae_forward.1} parent=1 // pred_check_branch
      %195 = sbr.rel (0) target = $region97
    $region96: #{vae_forward.1} parent=1 // pred_region
      %197 = dma.done [#allocation18], 16
    $region97: #{vae_forward.1} parent=1 // pred_fallthru
      _
    %v198 = vld [vmem:[%s0] sm:$0xff]
    %v199 = vld [vmem:[#allocation5] sm:$0xff]
    %v200 = vld [vmem:[#allocation5 + $0x8] sm:$0xff]
    %v201 = vld [vmem:[#allocation5 + $0x10] sm:$0xff]
    %v202 = vld [vmem:[#allocation5 + $0x18] sm:$0xff]
    %v203 = vld [vmem:[#allocation5 + $0x20] sm:$0xff]
    %v204 = vld [vmem:[#allocation5 + $0x28] sm:$0xff]
    %v205 = vld [vmem:[#allocation5 + $0x30] sm:$0xff]
    %v206 = vld [vmem:[#allocation5 + $0x38] sm:$0xff]
    %v207 = vld [vmem:[#allocation5 + $0x40] sm:$0xff]
    %v208 = vld [vmem:[#allocation5 + $0x48] sm:$0xff]
    %v209 = vld [vmem:[#allocation5 + $0x50] sm:$0xff]
    %v210 = vld [vmem:[#allocation5 + $0x58] sm:$0xff]
    %v211 = vld [vmem:[#allocation5 + $0x60] sm:$0xff]
    %v212 = vld [vmem:[#allocation5 + $0x68] sm:$0xff]
    %v213 = vld [vmem:[#allocation5 + $0x70] sm:$0xff]
    %v214 = vld [vmem:[#allocation5 + $0x78] sm:$0xff]
    %v215 = vld [vmem:[%s3] sm:$0x1]
    %v217 = vperm.slane %v215, 0
    %219 = vmatpush.msra.mxu0 %v214
    %220 = vmatpush.msra.mxu0 %v213
    %221 = vmatpush.msra.mxu0 %v212
    %222 = vmatpush.msra.mxu0 %v211
    %223 = vmatpush.msra.mxu0 %v210
    %224 = vmatpush.msra.mxu0 %v209
    %225 = vmatpush.msra.mxu0 %v208
    %226 = vmatpush.msra.mxu0 %v207
    %227 = vmatpush.msra.mxu0 %v206
    %228 = vmatpush.msra.mxu0 %v205
    %229 = vmatpush.msra.mxu0 %v204
    %230 = vmatpush.msra.mxu0 %v203
    %231 = vmatpush.msra.mxu0 %v202
    %232 = vmatpush.msra.mxu0 %v201
    %233 = vmatpush.msra.mxu0 %v200
    %234 = vmatpush.msra.mxu0 %v199
    %235 = vmatmul.f32.gmra.mxu0 %v198
    %v236 = vpop.f32.mrf.mxu0
    %v237 = vadd.f32 %v217, %v236
    %238 = vdwg.mxu0
    %v239 = vmax.f32 %v237, 0.0
    %v240 = vld [vmem:[#allocation7] sm:$0xff]
    %v241 = vld [vmem:[#allocation7 + $0x8] sm:$0xff]
    %v242 = vld [vmem:[#allocation7 + $0x10] sm:$0xff]
    %v243 = vld [vmem:[#allocation7 + $0x18] sm:$0xff]
    %v244 = vld [vmem:[#allocation7 + $0x20] sm:$0xff]
    %v245 = vld [vmem:[#allocation7 + $0x28] sm:$0xff]
    %v246 = vld [vmem:[#allocation7 + $0x30] sm:$0xff]
    %v247 = vld [vmem:[#allocation7 + $0x38] sm:$0xff]
    %v248 = vld [vmem:[#allocation7 + $0x40] sm:$0xff]
    %v249 = vld [vmem:[#allocation7 + $0x48] sm:$0xff]
    %v250 = vld [vmem:[#allocation7 + $0x50] sm:$0xff]
    %v251 = vld [vmem:[#allocation7 + $0x58] sm:$0xff]
    %v252 = vld [vmem:[#allocation7 + $0x60] sm:$0xff]
    %v253 = vld [vmem:[#allocation7 + $0x68] sm:$0xff]
    %v254 = vld [vmem:[#allocation7 + $0x70] sm:$0xff]
    %v255 = vld [vmem:[#allocation7 + $0x78] sm:$0xff]
    %v256 = vld [vmem:[%s5] sm:$0x1]
    %v258 = vperm.slane %v256, 0
    %260 = vmatpush.msra.mxu0 %v255
    %261 = vmatpush.msra.mxu0 %v254
    %262 = vmatpush.msra.mxu0 %v253
    %263 = vmatpush.msra.mxu0 %v252
    %264 = vmatpush.msra.mxu0 %v251
    %265 = vmatpush.msra.mxu0 %v250
    %266 = vmatpush.msra.mxu0 %v249
    %267 = vmatpush.msra.mxu0 %v248
    %268 = vmatpush.msra.mxu0 %v247
    %269 = vmatpush.msra.mxu0 %v246
    %270 = vmatpush.msra.mxu0 %v245
    %271 = vmatpush.msra.mxu0 %v244
    %272 = vmatpush.msra.mxu0 %v243
    %273 = vmatpush.msra.mxu0 %v242
    %274 = vmatpush.msra.mxu0 %v241
    %275 = vmatpush.msra.mxu0 %v240
    %276 = vmatmul.f32.gmra.mxu0 %v239
    %v277 = vpop.f32.mrf.mxu0
    %v278 = vadd.f32 %v258, %v277
    %279 = vdwg.mxu0
    %v280 = vmax.f32 %v278, 0.0
    %v281 = vld [vmem:[#allocation8] sm:$0xff]
    %v282 = vld [vmem:[#allocation8 + $0x8] sm:$0xff]
    %v283 = vld [vmem:[#allocation8 + $0x10] sm:$0xff]
    %v284 = vld [vmem:[#allocation8 + $0x18] sm:$0xff]
    %v285 = vld [vmem:[#allocation8 + $0x20] sm:$0xff]
    %v286 = vld [vmem:[#allocation8 + $0x28] sm:$0xff]
    %v287 = vld [vmem:[#allocation8 + $0x30] sm:$0xff]
    %v288 = vld [vmem:[#allocation8 + $0x38] sm:$0xff]
    %v289 = vld [vmem:[#allocation8 + $0x40] sm:$0xff]
    %v290 = vld [vmem:[#allocation8 + $0x48] sm:$0xff]
    %v291 = vld [vmem:[#allocation8 + $0x50] sm:$0xff]
    %v292 = vld [vmem:[#allocation8 + $0x58] sm:$0xff]
    %v293 = vld [vmem:[#allocation8 + $0x60] sm:$0xff]
    %v294 = vld [vmem:[#allocation8 + $0x68] sm:$0xff]
    %v295 = vld [vmem:[#allocation8 + $0x70] sm:$0xff]
    %v296 = vld [vmem:[#allocation8 + $0x78] sm:$0xff]
    %v297 = vld [vmem:[#allocation8 + $0x80] sm:$0xff]
    %v298 = vld [vmem:[#allocation8 + $0x88] sm:$0xff]
    %v299 = vld [vmem:[#allocation8 + $0x90] sm:$0xff]
    %v300 = vld [vmem:[#allocation8 + $0x98] sm:$0xff]
    %v301 = vld [vmem:[#allocation8 + $0xa0] sm:$0xff]
    %v302 = vld [vmem:[#allocation8 + $0xa8] sm:$0xff]
    %v303 = vld [vmem:[#allocation8 + $0xb0] sm:$0xff]
    %v304 = vld [vmem:[#allocation8 + $0xb8] sm:$0xff]
    %v305 = vld [vmem:[#allocation8 + $0xc0] sm:$0xff]
    %v306 = vld [vmem:[#allocation8 + $0xc8] sm:$0xff]
    %v307 = vld [vmem:[#allocation8 + $0xd0] sm:$0xff]
    %v308 = vld [vmem:[#allocation8 + $0xd8] sm:$0xff]
    %v309 = vld [vmem:[#allocation8 + $0xe0] sm:$0xff]
    %v310 = vld [vmem:[#allocation8 + $0xe8] sm:$0xff]
    %v311 = vld [vmem:[#allocation8 + $0xf0] sm:$0xff]
    %v312 = vld [vmem:[#allocation8 + $0xf8] sm:$0xff]
    %v313 = vld [vmem:[%s7] sm:$0x3]
    %v315 = vperm.slane %v313, 0
    %v316 = vperm.slane %v313, 1
    %319 = vmatpush.msra.mxu0 %v311
    %320 = vmatpush.msra.mxu0 %v309
    %321 = vmatpush.msra.mxu0 %v307
    %322 = vmatpush.msra.mxu0 %v305
    %323 = vmatpush.msra.mxu0 %v303
    %324 = vmatpush.msra.mxu0 %v301
    %325 = vmatpush.msra.mxu0 %v299
    %326 = vmatpush.msra.mxu0 %v297
    %327 = vmatpush.msra.mxu0 %v295
    %328 = vmatpush.msra.mxu0 %v293
    %329 = vmatpush.msra.mxu0 %v291
    %330 = vmatpush.msra.mxu0 %v289
    %331 = vmatpush.msra.mxu0 %v287
    %332 = vmatpush.msra.mxu0 %v285
    %333 = vmatpush.msra.mxu0 %v283
    %334 = vmatpush.msra.mxu0 %v281
    %335 = vmatmul.f32.gmra.mxu0 %v280
    %v336 = vpop.f32.mrf.mxu0
    %v337 = vadd.f32 %v315, %v336
    %338 = vdwg.mxu0
    %339 = vmatpush.msra.mxu0 %v312
    %340 = vmatpush.msra.mxu0 %v310
    %341 = vmatpush.msra.mxu0 %v308
    %342 = vmatpush.msra.mxu0 %v306
    %343 = vmatpush.msra.mxu0 %v304
    %344 = vmatpush.msra.mxu0 %v302
    %345 = vmatpush.msra.mxu0 %v300
    %346 = vmatpush.msra.mxu0 %v298
    %347 = vmatpush.msra.mxu0 %v296
    %348 = vmatpush.msra.mxu0 %v294
    %349 = vmatpush.msra.mxu0 %v292
    %350 = vmatpush.msra.mxu0 %v290
    %351 = vmatpush.msra.mxu0 %v288
    %352 = vmatpush.msra.mxu0 %v286
    %353 = vmatpush.msra.mxu0 %v284
    %354 = vmatpush.msra.mxu0 %v282
    %355 = vmatmul.f32.gmra.mxu0 %v280
    %v356 = vpop.f32.mrf.mxu0
    %v357 = vadd.f32 %v316, %v356
    %358 = vdwg.mxu0
    %v359 = vmul.f32 %v357, 0.5
    %v360 = vmul.f32 %v359, 1.442695
    %v361 = vpow.pop %v360
    %v362 = vld [vmem:[#allocation2] sm:$0xff]
    %v363 = vmul.f32 %v361, %v362
    %v364 = vadd.f32 %v337, %v363
    %v365 = vlaneseq
    %v366 = vshrl.u32 %v365, 7
    %s367 = smul.u32 0, 8
    %v368 = vstv %s367
    %v369 = vadd.s32 %v366, %v368
    %v370 = vadd.f32 %v357, 1.0
    %v371 = vmul.f32 %v337, %v337
    %v372 = vsub.f32 %v370, %v371
    %v373 = vmul.f32 %v361, %v361
    %v374 = vsub.f32 %v372, %v373
    %vm375 = vcmp.lt.s32.totalorder %v369, 8
    %v376 = vsel %vm375, 1, 0
    %vm377 = vcmp.eq.s32.totalorder %v376, 1
    %v378 = vsel %vm377, %v374, 0.0
    %379 = vadd.xlane.f32.xlu0 %v378
    %v380 = vpop.xlane.xlu0 %379
    %v381 = vrot.slane %v380, 4
    %v382 = vadd.f32 %v380, %v381
    %v383 = vrot.slane %v382, 2
    %v384 = vadd.f32 %v382, %v383
    %v385 = vrot.slane %v384, 1
    %v386 = vadd.f32 %v384, %v385
    %s387 = vtos %v386
    %s388 = smul.f32 %s387, -0.5
    %v389 = vstv %s388
    %390 = vst [vmem:[%s15] sm:$0xff] %v389
    %v391 = vld [vmem:[#allocation10] sm:$0xff]
    %v392 = vld [vmem:[#allocation10 + $0x8] sm:$0xff]
    %v393 = vld [vmem:[#allocation11] sm:$0x1]
    %v395 = vperm.slane %v393, 0
    %vm397 = vcmask 130048
    %v399 = vsel %vm397, %v364, 0
    %401 = vmatpush.msra.mxu0 0.0
    %402 = vmatpush.msra.mxu0 0.0
    %403 = vmatpush.msra.mxu0 0.0
    %404 = vmatpush.msra.mxu0 0.0
    %405 = vmatpush.msra.mxu0 0.0
    %406 = vmatpush.msra.mxu0 0.0
    %407 = vmatpush.msra.mxu0 0.0
    %408 = vmatpush.msra.mxu0 0.0
    %409 = vmatpush.msra.mxu0 0.0
    %410 = vmatpush.msra.mxu0 0.0
    %411 = vmatpush.msra.mxu0 0.0
    %412 = vmatpush.msra.mxu0 0.0
    %413 = vmatpush.msra.mxu0 0.0
    %414 = vmatpush.msra.mxu0 0.0
    %415 = vmatpush.msra.mxu0 %v392
    %416 = vmatpush.msra.mxu0 %v391
    %417 = vmatmul.f32.gmra.mxu0 %v399
    %v418 = vpop.f32.mrf.mxu0
    %v419 = vadd.f32 %v395, %v418
    %420 = vdwg.mxu0
    %v421 = vmax.f32 %v419, 0.0
    %v422 = vld [vmem:[#allocation13] sm:$0xff]
    %v423 = vld [vmem:[#allocation13 + $0x8] sm:$0xff]
    %v424 = vld [vmem:[#allocation13 + $0x10] sm:$0xff]
    %v425 = vld [vmem:[#allocation13 + $0x18] sm:$0xff]
    %v426 = vld [vmem:[#allocation13 + $0x20] sm:$0xff]
    %v427 = vld [vmem:[#allocation13 + $0x28] sm:$0xff]
    %v428 = vld [vmem:[#allocation13 + $0x30] sm:$0xff]
    %v429 = vld [vmem:[#allocation13 + $0x38] sm:$0xff]
    %v430 = vld [vmem:[#allocation13 + $0x40] sm:$0xff]
    %v431 = vld [vmem:[#allocation13 + $0x48] sm:$0xff]
    %v432 = vld [vmem:[#allocation13 + $0x50] sm:$0xff]
    %v433 = vld [vmem:[#allocation13 + $0x58] sm:$0xff]
    %v434 = vld [vmem:[#allocation13 + $0x60] sm:$0xff]
    %v435 = vld [vmem:[#allocation13 + $0x68] sm:$0xff]
    %v436 = vld [vmem:[#allocation13 + $0x70] sm:$0xff]
    %v437 = vld [vmem:[#allocation13 + $0x78] sm:$0xff]
    %v438 = vld [vmem:[#allocation14] sm:$0x1]
    %v440 = vperm.slane %v438, 0
    %442 = vmatpush.msra.mxu0 %v437
    %443 = vmatpush.msra.mxu0 %v436
    %444 = vmatpush.msra.mxu0 %v435
    %445 = vmatpush.msra.mxu0 %v434
    %446 = vmatpush.msra.mxu0 %v433
    %447 = vmatpush.msra.mxu0 %v432
    %448 = vmatpush.msra.mxu0 %v431
    %449 = vmatpush.msra.mxu0 %v430
    %450 = vmatpush.msra.mxu0 %v429
    %451 = vmatpush.msra.mxu0 %v428
    %452 = vmatpush.msra.mxu0 %v427
    %453 = vmatpush.msra.mxu0 %v426
    %454 = vmatpush.msra.mxu0 %v425
    %455 = vmatpush.msra.mxu0 %v424
    %456 = vmatpush.msra.mxu0 %v423
    %457 = vmatpush.msra.mxu0 %v422
    %458 = vmatmul.f32.gmra.mxu0 %v421
    %v459 = vpop.f32.mrf.mxu0
    %v460 = vadd.f32 %v440, %v459
    %461 = vdwg.mxu0
    %v462 = vmax.f32 %v460, 0.0
    %v463 = vld [vmem:[#allocation16] sm:$0xff]
    %v464 = vld [vmem:[#allocation16 + $0x8] sm:$0xff]
    %v465 = vld [vmem:[#allocation16 + $0x10] sm:$0xff]
    %v466 = vld [vmem:[#allocation16 + $0x18] sm:$0xff]
    %v467 = vld [vmem:[#allocation16 + $0x20] sm:$0xff]
    %v468 = vld [vmem:[#allocation16 + $0x28] sm:$0xff]
    %v469 = vld [vmem:[#allocation16 + $0x30] sm:$0xff]
    %v470 = vld [vmem:[#allocation16 + $0x38] sm:$0xff]
    %v471 = vld [vmem:[#allocation16 + $0x40] sm:$0xff]
    %v472 = vld [vmem:[#allocation16 + $0x48] sm:$0xff]
    %v473 = vld [vmem:[#allocation16 + $0x50] sm:$0xff]
    %v474 = vld [vmem:[#allocation16 + $0x58] sm:$0xff]
    %v475 = vld [vmem:[#allocation16 + $0x60] sm:$0xff]
    %v476 = vld [vmem:[#allocation16 + $0x68] sm:$0xff]
    %v477 = vld [vmem:[#allocation16 + $0x70] sm:$0xff]
    %v478 = vld [vmem:[#allocation16 + $0x78] sm:$0xff]
    %v479 = vld [vmem:[#allocation17] sm:$0x1]
    %v481 = vperm.slane %v479, 0
    %483 = vmatpush.msra.mxu0 %v478
    %484 = vmatpush.msra.mxu0 %v477
    %485 = vmatpush.msra.mxu0 %v476
    %486 = vmatpush.msra.mxu0 %v475
    %487 = vmatpush.msra.mxu0 %v474
    %488 = vmatpush.msra.mxu0 %v473
    %489 = vmatpush.msra.mxu0 %v472
    %490 = vmatpush.msra.mxu0 %v471
    %491 = vmatpush.msra.mxu0 %v470
    %492 = vmatpush.msra.mxu0 %v469
    %493 = vmatpush.msra.mxu0 %v468
    %494 = vmatpush.msra.mxu0 %v467
    %495 = vmatpush.msra.mxu0 %v466
    %496 = vmatpush.msra.mxu0 %v465
    %497 = vmatpush.msra.mxu0 %v464
    %498 = vmatpush.msra.mxu0 %v463
    %499 = vmatmul.f32.gmra.mxu0 %v462
    %v500 = vpop.f32.mrf.mxu0
    %v501 = vadd.f32 %v481, %v500
    %502 = vdwg.mxu0
    %v503 = vsub.f32 0.0, %v501
    %v504 = vmul.f32 %v503, 1.442695
    %v505 = vpow.pop %v504
    %v506 = vadd.f32 %v505, 1.0
    %v507 = vrcp.pop %v506
    %v508 = vmul.f32 %v506, %v507
    %v509 = vsub.f32 1.0, %v508
    %v510 = vmul.f32 %v507, %v509
    %v511 = vadd.f32 %v507, %v510
    %vm512 = vweird.f32 %v506
    %vm513 = vweird.f32 %v507
    %vm514 = vmor %vm512, %vm513
    %v515 = vsel %vm514, %v507, %v511
    %v516 = vand.u32 2147483647, %v506
    %vm517 = vcmp.eq.f32.partialorder %v516, 8.507059e+37
    %v518 = vand.u32 %v506, 2147483648
    %v519 = vor.u32 1.1754944e-38, %v518
    %v520 = vsel %vm517, %v519, %v515
    %521 = vst [vmem:[#allocation19] sm:$0xff] %v520
    // Predicated region
    $region98: #{vae_forward.1} parent=1 // pred_check
      _
    $region99: #{vae_forward.1} parent=1 // pred_check_branch
      %523 = sbr.rel (0) target = $region101
    $region100: #{vae_forward.1} parent=1 // pred_region
      %525 = vsyncadd [#allocation4], 0
      %s527 = sshll.u32 [#allocation19], 4
      %s528 = int_to_ptr.vmem [resolvable:$true] %s527
      %s529 = sshll.u32 %s14, 4
      %s530 = int_to_ptr.hbm [resolvable:$true] %s529
      %532 = dma.vmem_to_hbm [thread:$0]  %s528, 128, %s530, [#allocation4]
    $region101: #{vae_forward.1} parent=1 // pred_fallthru
      _
    // Predicated region
    $region102: #{vae_forward.1} parent=1 // pred_check
      _
    $region103: #{vae_forward.1} parent=1 // pred_check_branch
      %534 = sbr.rel (0) target = $region105
    $region104: #{vae_forward.1} parent=1 // pred_region
      _
    $region105: #{vae_forward.1} parent=1 // pred_fallthru
      _
    // Predicated region
    $region106: #{vae_forward.1} parent=1 // pred_check
      _
    $region107: #{vae_forward.1} parent=1 // pred_check_branch
      %536 = sbr.rel (0) target = $region109
    $region108: #{vae_forward.1} parent=1 // pred_region
      %538 = dma.done [#allocation4], 128
    $region109: #{vae_forward.1} parent=1 // pred_fallthru
      _
    // Predicated region
    $region110: #{vae_forward.1} parent=1 // pred_check
      _
    $region111: #{vae_forward.1} parent=1 // pred_check_branch
      %540 = sbr.rel (0) target = $region113
    $region112: #{vae_forward.1} parent=1 // pred_region
      _
    $region113: #{vae_forward.1} parent=1 // pred_fallthru
      _
    %541 = vsyncpa [#allocation3], 1
    %542 = vsyncpa [#allocation6], 1
    %543 = vsyncpa [#allocation9], 1
    %544 = vsyncpa [#allocation12], 1
    %545 = vsyncpa [#allocation15], 1
    %546 = vsyncpa [#allocation18], 1
    %547 = vsyncpa [#allocation4], 1

</llo_original>
